<compile_context>
chip_gen: v7x
topology: tpu7x:2x2x1
jax: 0.10.0
libtpu: 0.0.40
codegen_flags: <defaults>
</compile_context>

<pallas_src>
import functools

import jax
import jax.numpy as jnp
from jax.experimental import pallas as pl
from jax.experimental.pallas import tpu as pltpu


def _rmsnorm_kernel(x_ref, scale_ref, offset_ref, o_ref, *,
                    eps: float, inv_sqrt_c: float):
    # x_ref / o_ref block: (C, HW_TILE); scale_ref / offset_ref: (C, 1)
    x = x_ref[...]                                       # (C, T)
    sumsq = jnp.sum(x * x, axis=0, keepdims=True)        # (1, T)
    # PyTorch semantics: rms = ||x||_2 / sqrt(C); eps is added AFTER the sqrt.
    rms = jnp.sqrt(sumsq) * inv_sqrt_c                   # (1, T)
    # One reciprocal per lane column instead of a C x T per-element divide.
    inv = pl.reciprocal(rms + eps, approx=False)         # (1, T)
    o_ref[...] = (x * inv) * scale_ref[...] + offset_ref[...]


def _pick_hw_tile(c: int, hw: int, itemsize: int,
                  target_lanes: int = 2048,
                  vmem_budget_bytes: int = 12 * 1024 * 1024) -> int:
    """Spatial (lane) tile: multiple of 128, capped so the double-buffered
    input + output blocks stay within a VMEM budget that is safe on all of
    v5e / v6e / v7x (smallest default scoped limit is 16 MiB on v5e)."""
    # 2 input buffers + 2 output buffers per lane column of the block.
    bytes_per_lane = 4 * c * itemsize
    budget_lanes = max(128, (vmem_budget_bytes // bytes_per_lane) // 128 * 128)
    tile = min(target_lanes, budget_lanes)
    return hw if hw <= tile else tile


def rmsnorm_pallas(x: jax.Array, scale: jax.Array, offset: jax.Array,
                   eps: float = 1e-6) -> jax.Array:
    """x: (N, C, H, W); scale/offset: (C, 1, 1). Returns (N, C, H, W)."""
    n, c, h, w = x.shape
    hw = h * w
    x2 = x.reshape(n, c, hw)
    scale2 = scale.reshape(c, 1).astype(x.dtype)
    offset2 = offset.reshape(c, 1).astype(x.dtype)

    hw_tile = _pick_hw_tile(c, hw, x.dtype.itemsize)
    grid = (n, pl.cdiv(hw, hw_tile))

    kernel = functools.partial(_rmsnorm_kernel, eps=eps, inv_sqrt_c=c ** -0.5)

    # Purely bandwidth-bound kernel: advertise that to XLA's scheduler.
    cost = pl.CostEstimate(
        flops=6 * n * c * hw,
        transcendentals=n * hw,
        bytes_accessed=(2 * n * c * hw + 2 * c) * x.dtype.itemsize,
    )

    out = pl.pallas_call(
        kernel,
        out_shape=jax.ShapeDtypeStruct((n, c, hw), x.dtype),
        grid_spec=pltpu.PrefetchScalarGridSpec(
            num_scalar_prefetch=0,
            grid=grid,
            in_specs=[
                pl.BlockSpec((pl.Squeezed(), c, hw_tile),
                             lambda i, j: (i, 0, j)),
                pl.BlockSpec((c, 1), lambda i, j: (0, 0)),
                pl.BlockSpec((c, 1), lambda i, j: (0, 0)),
            ],
            out_specs=pl.BlockSpec((pl.Squeezed(), c, hw_tile),
                                   lambda i, j: (i, 0, j)),
        ),
        compiler_params=pltpu.CompilerParams(
            dimension_semantics=("parallel", "parallel"),
            vmem_limit_bytes=32 * 1024 * 1024,
        ),
        cost_estimate=cost,
    )(x2, scale2, offset2)

    return out.reshape(n, c, h, w)


def rmsnorm_ref(x, scale, offset, eps=1e-6):
    c = x.shape[1]
    norm_x = jnp.sqrt(jnp.sum(x * x, axis=1, keepdims=True))
    rms_x = norm_x * (c ** -0.5)
    x_normed = x / (rms_x + eps)
    return scale[None, :, :, :] * x_normed + offset[None, :, :, :]


if __name__ == "__main__":
    key = jax.random.PRNGKey(0)
    N, C, H, W = 2, 4, 16, 16

    x = jax.random.normal(key, (N, C, H, W), dtype=jnp.float32)
    # Module init is scale=ones(dim,1,1), offset=zeros(dim,1,1); perturb
    # deterministically so the affine part is exercised.
    scale = jnp.ones((C, 1, 1), dtype=jnp.float32) * 1.5
    offset = jnp.full((C, 1, 1), 0.25, dtype=jnp.float32)

    y = jax.block_until_ready(rmsnorm_pallas(x, scale, offset))
    y_ref = rmsnorm_ref(x, scale, offset)

    assert y.shape == (N, C, H, W)
    assert jnp.allclose(y, y_ref, atol=1e-5, rtol=1e-5)

    print("KERNEL_OK")
</pallas_src>

<mosaic_0001>
module attributes {stable_mosaic.version = 11 : i64} {
  func.func @_rmsnorm_kernel(%arg0: i32, %arg1: i32, %arg2: memref<1x4x256xf32, #tpu.memory_space<vmem>>, %arg3: memref<4x1xf32, #tpu.memory_space<vmem>>, %arg4: memref<4x1xf32, #tpu.memory_space<vmem>>, %arg5: memref<1x4x256xf32, #tpu.memory_space<vmem>>) attributes {dimension_semantics = [#tpu.dimension_semantics<parallel>, #tpu.dimension_semantics<parallel>], iteration_bounds = array<i64: 2, 1>, scalar_prefetch = 0 : i64, scratch_operands = 0 : i64, tpu.core_type = #tpu.core_type<tc>, window_params = [{transform_indices = @transform_0, window_bounds = array<i64: 1, 4, 256>}, {pipeline_mode = #tpu.pipeline_mode<synchronous>, transform_indices = @transform_1, window_bounds = array<i64: 4, 1>}, {pipeline_mode = #tpu.pipeline_mode<synchronous>, transform_indices = @transform_2, window_bounds = array<i64: 4, 1>}, {transform_indices = @transform_3, window_bounds = array<i64: 1, 4, 256>}]} {
    %c0 = arith.constant 0 : index
    %c0_0 = arith.constant 0 : index
    %c0_1 = arith.constant 0 : index
    %0 = vector.load %arg2[%c0, %c0_0, %c0_1] : memref<1x4x256xf32, #tpu.memory_space<vmem>>, vector<1x4x256xf32>
    %1 = vector.shape_cast %0 : vector<1x4x256xf32> to vector<4x256xf32>
    %2 = arith.mulf %1, %1 : vector<4x256xf32>
    %cst = arith.constant dense<0.000000e+00> : vector<256xf32>
    %3 = vector.multi_reduction <add>, %2, %cst [0] : vector<4x256xf32> to vector<256xf32>
    %4 = vector.shape_cast %3 : vector<256xf32> to vector<1x256xf32>
    %5 = math.sqrt %4 : vector<1x256xf32>
    %cst_2 = arith.constant 5.000000e-01 : f32
    %6 = vector.broadcast %cst_2 : f32 to vector<1x256xf32>
    %7 = arith.mulf %5, %6 : vector<1x256xf32>
    %cst_3 = arith.constant 9.99999997E-7 : f32
    %8 = vector.broadcast %cst_3 : f32 to vector<1x256xf32>
    %9 = arith.addf %7, %8 : vector<1x256xf32>
    %10 = tpu.reciprocal %9 : vector<1x256xf32> -> vector<1x256xf32>
    %11 = vector.broadcast %10 : vector<1x256xf32> to vector<4x256xf32>
    %12 = arith.mulf %1, %11 : vector<4x256xf32>
    %c0_4 = arith.constant 0 : index
    %c0_5 = arith.constant 0 : index
    %13 = vector.load %arg3[%c0_4, %c0_5] : memref<4x1xf32, #tpu.memory_space<vmem>>, vector<4x1xf32>
    %14 = vector.broadcast %13 : vector<4x1xf32> to vector<4x256xf32>
    %15 = arith.mulf %12, %14 : vector<4x256xf32>
    %c0_6 = arith.constant 0 : index
    %c0_7 = arith.constant 0 : index
    %16 = vector.load %arg4[%c0_6, %c0_7] : memref<4x1xf32, #tpu.memory_space<vmem>>, vector<4x1xf32>
    %17 = vector.broadcast %16 : vector<4x1xf32> to vector<4x256xf32>
    %18 = arith.addf %15, %17 : vector<4x256xf32>
    %c0_8 = arith.constant 0 : index
    %c0_9 = arith.constant 0 : index
    %c0_10 = arith.constant 0 : index
    %19 = vector.load %arg5[%c0_8, %c0_9, %c0_10] : memref<1x4x256xf32, #tpu.memory_space<vmem>>, vector<1x4x256xf32>
    %20 = vector.shape_cast %19 : vector<1x4x256xf32> to vector<4x256xf32>
    %21 = vector.shape_cast %18 : vector<4x256xf32> to vector<1x4x256xf32>
    tpu.vector_store %arg5[%c0_8, %c0_9, %c0_10], %21 {strides = array<i32>} : memref<1x4x256xf32, #tpu.memory_space<vmem>>, vector<1x4x256xf32>,
    return
  }
  func.func @transform_0(%arg0: i32, %arg1: i32) -> (i32, i32, i32) {
    %c0_i32 = arith.constant 0 : i32
    %c0_i32_0 = arith.constant 0 : i32
    return %arg0, %c0_i32, %arg1 : i32, i32, i32
  }
  func.func @transform_1(%arg0: i32, %arg1: i32) -> (i32, i32) {
    %c0_i32 = arith.constant 0 : i32
    %c0_i32_0 = arith.constant 0 : i32
    %c0_i32_1 = arith.constant 0 : i32
    return %c0_i32, %c0_i32_0 : i32, i32
  }
  func.func @transform_2(%arg0: i32, %arg1: i32) -> (i32, i32) {
    %c0_i32 = arith.constant 0 : i32
    %c0_i32_0 = arith.constant 0 : i32
    %c0_i32_1 = arith.constant 0 : i32
    return %c0_i32, %c0_i32_0 : i32, i32
  }
  func.func @transform_3(%arg0: i32, %arg1: i32) -> (i32, i32, i32) {
    %c0_i32 = arith.constant 0 : i32
    %c0_i32_0 = arith.constant 0 : i32
    return %arg0, %c0_i32, %arg1 : i32, i32, i32
  }
}

</mosaic_0001>

<llo_original>
// kernel: tpu_custom_call.1
$region0: #{tpu_custom_call.1}
  #allocation0 [shape = 'u32[]', space=smem, size = 0x4, offset = 0x4, fixed_abs, tag = 'smem constant byte address 0x4 - core index']
  #allocation1 [shape = 'u32[144,128]{1,0:T(1,128)}', space=vmem, size = 0x12000, scoped, tag = 'internal scratch']
  %s0 = inlined_call_operand.hbm [shape: f32[2,4,256], index: 0, kind: input, shape index: {}]
  %s1 = inlined_call_operand.vmem [shape: f32[4,1], index: 1, kind: input, shape index: {}]
  %s2 = inlined_call_operand.vmem [shape: f32[4,1], index: 2, kind: input, shape index: {}]
  %s3 = inlined_call_operand.hbm [shape: f32[2,4,256], index: 3, kind: output, shape index: {}]
  %s4 = sld [smem:[#allocation0]]
  $region49: #{tpu_custom_call.1} parent=0
    _
  %s6 = ssub.s32 1, %s4
  %s7 = scalar_select 0, %s6, %s4
  $region1: #{tpu_custom_call.1} parent=0
    #allocation2 [shape = 'u8[8192]{0}', space=vmem, size = 0x2000, scoped, tag = 'input window, operand 0']
    #allocation3 [shape = 's32[2]{0}', space=sflag, size = 0x8, scoped, tag = 'scoped memory for tpu_custom_call.1']
    #allocation4 [shape = 's32[2]{0}', space=sflag, size = 0x8, scoped, tag = 'scoped memory for tpu_custom_call.1']
    #allocation5 [shape = 'u8[8192]{0}', space=vmem, size = 0x2000, scoped, tag = 'output window, operand 0']
    %8 = vsyncpa [#allocation3], 0
    %s9 = scalar_lea.sflag [#allocation3], 1
    %10 = vsyncpa %s9, 0
    %11 = vsyncpa [#allocation4], 0
    %s12 = scalar_lea.sflag [#allocation4], 1
    %13 = vsyncpa %s12, 0
    loop: start=0, step=1, limit=4
    $region2: #{tpu_custom_call.1} parent=1 // loop_pre_header
      _
    $region3: #{tpu_custom_call.1} parent=1 // loop_header
      %s15 = sphi 0, %s19
      %p16 = scmp.ge.s32.totalorder %s15, 4
      %s22 = sphi 0, %s34
      %s23 = sphi 0, %s30
      %s24 = sphi 0, %s22
      %s25 = sphi 0, %s23
      %s26 = sphi 0, %s24
      %s27 = sphi 0, %s25
      %s39 = sphi 0, %s41
      %s42 = sphi 0, %s39
      %s43 = sphi 0, %s42
      %s59 = sphi 0, %s43
      %s63 = sphi 0, %s63
      %s65 = sphi 0, %s63
      %s66 = sphi 0, %s65
      %s80 = sphi 0, %s66
      %s84 = sphi 0, %s84
      %s86 = sphi 0, %s84
      %s87 = sphi 0, %s86
      %s101 = sphi 0, %s87
      %s109 = sphi 0, %s111
      %s112 = sphi 0, %s109
      %s113 = sphi 0, %s112
      %s129 = sphi 0, %s113
    $region4: #{tpu_custom_call.1} parent=1 // loop_header_branch
      %18 = sbr.rel (%p16) target = $region8
    $region5: #{tpu_custom_call.1} parent=1 // loop_body
      %s20 = ssub.s32 %s15, 1
      %s21 = ssub.s32 %s15, 2
      %s28 = sadd.s32 1, %s23
      %p29 = scmp.ge.s32.totalorder %s28, 1
      %s30 = scalar_select %p29, 0, %s28
      %s31 = sadd.s32 1, %s22
      %s32 = scalar_select %p29, %s31, %s22
      %p33 = scmp.ge.s32.totalorder %s32, 2
      %s34 = scalar_select %p33, 0, %s32
      %s35 = ssub.s32 %s22, %s34
      %s36 = ssub.s32 %s23, %s30
      %s37 = sor.u32 %s35, %s36
      %p38 = scmp.eq.s32.totalorder %s37, 0
      %s40 = sadd.s32 %s39, 1
      %s41 = scalar_select %p38, %s39, %s40
      %p44 = pneg %p38
      %p45 = scmp.eq.s32.totalorder %s15, 1
      %p46 = por %p44, %p45
      %p47 = scmp.ne.s32.totalorder %s39, %s42
      %p48 = scmp.eq.s32.totalorder %s15, 0
      %p49 = por %p47, %p48
      %p50 = scmp.ne.s32.totalorder %s39, %s42
      %p51 = scmp.eq.s32.totalorder %s20, 1
      %p52 = por %p50, %p51
      %p53 = scmp.ne.s32.totalorder %s42, %s43
      %p54 = scmp.eq.s32.totalorder %s20, 0
      %p55 = por %p53, %p54
      %p56 = scmp.ne.s32.totalorder %s42, %s43
      %p57 = scmp.eq.s32.totalorder %s21, 1
      %p58 = por %p56, %p57
      %p60 = scmp.ne.s32.totalorder %s43, %s59
      %p61 = scmp.eq.s32.totalorder %s21, 0
      %p62 = por %p60, %p61
      %s64 = sadd.s32 %s63, 1
      %p67 = scmp.eq.s32.totalorder %s15, 1
      %p68 = scmp.ne.s32.totalorder %s63, %s65
      %p69 = scmp.eq.s32.totalorder %s15, 0
      %p70 = por %p68, %p69
      %p71 = scmp.ne.s32.totalorder %s63, %s65
      %p72 = scmp.eq.s32.totalorder %s20, 1
      %p73 = por %p71, %p72
      %p74 = scmp.ne.s32.totalorder %s65, %s66
      %p75 = scmp.eq.s32.totalorder %s20, 0
      %p76 = por %p74, %p75
      %p77 = scmp.ne.s32.totalorder %s65, %s66
      %p78 = scmp.eq.s32.totalorder %s21, 1
      %p79 = por %p77, %p78
      %p81 = scmp.ne.s32.totalorder %s66, %s80
      %p82 = scmp.eq.s32.totalorder %s21, 0
      %p83 = por %p81, %p82
      %s85 = sadd.s32 %s84, 1
      %p88 = scmp.eq.s32.totalorder %s15, 1
      %p89 = scmp.ne.s32.totalorder %s84, %s86
      %p90 = scmp.eq.s32.totalorder %s15, 0
      %p91 = por %p89, %p90
      %p92 = scmp.ne.s32.totalorder %s84, %s86
      %p93 = scmp.eq.s32.totalorder %s20, 1
      %p94 = por %p92, %p93
      %p95 = scmp.ne.s32.totalorder %s86, %s87
      %p96 = scmp.eq.s32.totalorder %s20, 0
      %p97 = por %p95, %p96
      %p98 = scmp.ne.s32.totalorder %s86, %s87
      %p99 = scmp.eq.s32.totalorder %s21, 1
      %p100 = por %p98, %p99
      %p102 = scmp.ne.s32.totalorder %s87, %s101
      %p103 = scmp.eq.s32.totalorder %s21, 0
      %p104 = por %p102, %p103
      %s105 = ssub.s32 %s22, %s34
      %s106 = ssub.s32 %s23, %s30
      %s107 = sor.u32 %s105, %s106
      %p108 = scmp.eq.s32.totalorder %s107, 0
      %s110 = sadd.s32 %s109, 1
      %s111 = scalar_select %p108, %s109, %s110
      %p114 = pneg %p108
      %p115 = scmp.eq.s32.totalorder %s15, 1
      %p116 = por %p114, %p115
      %p117 = scmp.ne.s32.totalorder %s109, %s112
      %p118 = scmp.eq.s32.totalorder %s15, 0
      %p119 = por %p117, %p118
      %p120 = scmp.ne.s32.totalorder %s109, %s112
      %p121 = scmp.eq.s32.totalorder %s20, 1
      %p122 = por %p120, %p121
      %p123 = scmp.ne.s32.totalorder %s112, %s113
      %p124 = scmp.eq.s32.totalorder %s20, 0
      %p125 = por %p123, %p124
      %p126 = scmp.ne.s32.totalorder %s112, %s113
      %p127 = scmp.eq.s32.totalorder %s21, 1
      %p128 = por %p126, %p127
      %p130 = scmp.ne.s32.totalorder %s113, %s129
      %p131 = scmp.eq.s32.totalorder %s21, 0
      %p132 = por %p130, %p131
      %p133 = scmp.le.s32.totalorder 1, %s15
      %p134 = scmp.lt.s32.totalorder %s15, 3
      %p135 = pnand %p133, %p134
      %p136 = pneg %p135
      // Predicated region
      $region9: #{tpu_custom_call.1} parent=5 // pred_check
        _
      $region10: #{tpu_custom_call.1} parent=5 // pred_check_branch
        %138 = sbr.rel (%p135) target = $region12
      $region11: #{tpu_custom_call.1} parent=5 // pred_region
        %s139 = ssub.s32 %s15, 1
        // Predicated region
        $region13: #{tpu_custom_call.1} parent=11 // pred_check
          %p140 = pneg %p76
        $region14: #{tpu_custom_call.1} parent=11 // pred_check_branch
          %142 = sbr.rel (%p140) target = $region16
        $region15: #{tpu_custom_call.1} parent=11 // pred_region
          _
        $region16: #{tpu_custom_call.1} parent=11 // pred_fallthru
          _
        // Predicated region
        $region17: #{tpu_custom_call.1} parent=11 // pred_check
          %p143 = pneg %p97
        $region18: #{tpu_custom_call.1} parent=11 // pred_check_branch
          %145 = sbr.rel (%p143) target = $region20
        $region19: #{tpu_custom_call.1} parent=11 // pred_region
          _
        $region20: #{tpu_custom_call.1} parent=11 // pred_fallthru
          _
      $region12: #{tpu_custom_call.1} parent=5 // pred_fallthru
        _
      %p146 = scmp.lt.s32.totalorder %s15, 2
      // Predicated region
      $region21: #{tpu_custom_call.1} parent=5 // pred_check
        %p147 = pneg %p146
      $region22: #{tpu_custom_call.1} parent=5 // pred_check_branch
        %149 = sbr.rel (%p147) target = $region24
      $region23: #{tpu_custom_call.1} parent=5 // pred_region
        // Predicated region
        $region25: #{tpu_custom_call.1} parent=23 // pred_check
          %p150 = pneg %p49
        $region26: #{tpu_custom_call.1} parent=23 // pred_check_branch
          %152 = sbr.rel (%p150) target = $region28
        $region27: #{tpu_custom_call.1} parent=23 // pred_region
          %s153 = sand.u32 %s39, 1
          %s154 = scalar_lea.sflag [#allocation3], %s153
          %s155 = sand.u32 %s39, 1
          %s156 = smul.addr %s155, 8
          %s157 = scalar_lea.vmem [#allocation2], %s156
          %s158 = smul.u32 2, %s23
          %s160 = ssub.s32 128, 128
          %161 = vsyncadd %s154, %s160
          %s162 = smul.addr %s22, 2
          %s163 = sadd.s32 %s158, %s162
          %s164 = smul.addr %s163, 64
          %s165 = scalar_lea.hbm %s0, %s164
          %s167 = sshll.u32 %s157, 4
          %s168 = int_to_ptr.vmem [resolvable:$true] %s167
          %170 = dma.hbm_to_vmem [thread:$0]  %s165, 128, %s168, %s154
        $region28: #{tpu_custom_call.1} parent=23 // pred_fallthru
          _
      $region24: #{tpu_custom_call.1} parent=5 // pred_fallthru
        _
      %p171 = scmp.le.s32.totalorder 1, %s15
      %p172 = scmp.lt.s32.totalorder %s15, 3
      %p173 = pnand %p171, %p172
      %p174 = pneg %p173
      // Predicated region
      $region29: #{tpu_custom_call.1} parent=5 // pred_check
        _
      $region30: #{tpu_custom_call.1} parent=5 // pred_check_branch
        %176 = sbr.rel (%p173) target = $region32
      $region31: #{tpu_custom_call.1} parent=5 // pred_region
        %s177 = ssub.s32 %s15, 1
        %s178 = sand.u32 %s42, 1
        %s179 = scalar_lea.sflag [#allocation3], %s178
        %s180 = sand.u32 %s42, 1
        %s181 = smul.addr %s180, 8
        %s182 = scalar_lea.vmem [#allocation2], %s181
        // Predicated region
        $region33: #{tpu_custom_call.1} parent=31 // pred_check
          %p183 = pneg %p55
        $region34: #{tpu_custom_call.1} parent=31 // pred_check_branch
          %185 = sbr.rel (%p183) target = $region36
        $region35: #{tpu_custom_call.1} parent=31 // pred_region
          %186 = dma.done %s179, 128
        $region36: #{tpu_custom_call.1} parent=31 // pred_fallthru
          _
        %s187 = sand.u32 %s42, 1
        %s188 = scalar_lea.sflag [#allocation3], %s187
        %s189 = sand.u32 %s42, 1
        %s190 = smul.addr %s189, 8
        %s191 = scalar_lea.vmem [#allocation2], %s190
        %p192 = pneg %p55
        %p193 = pneg %p52
        %p194 = pneg %p76
        %p195 = pneg %p73
        %p196 = pneg %p97
        %p197 = pneg %p94
        %p198 = pneg %p125
        %p199 = pneg %p122
        %s200 = sand.u32 %s112, 1
        %s201 = scalar_lea.sflag [#allocation4], %s200
        %s202 = sand.u32 %s112, 1
        %s203 = smul.addr %s202, 8
        %s204 = scalar_lea.vmem [#allocation5], %s203
        %s205 = smul.u32 2, %s25
        %s206 = smul.u32 2, %s25
        %v207 = vld [vmem:[%s182] sm:$0xff]
        %v208 = vmul.f32 %v207, %v207
        %v210 = vcombine.high %v208, %v208
        %vm212 = vcmask 1043456
        %v213 = vsel %vm212, %v208, 0.0
        %v214 = vrot.slane %v213, 4
        %v215 = vadd.f32 %v213, %v214
        %v216 = vrot.slane %v215, 2
        %v217 = vadd.f32 %v215, %v216
        %v218 = vrot.slane %v217, 1
        %v219 = vadd.f32 %v217, %v218
        %v220 = vsel %vm212, %v210, 0.0
        %v221 = vrot.slane %v220, 4
        %v222 = vadd.f32 %v220, %v221
        %v223 = vrot.slane %v222, 2
        %v224 = vadd.f32 %v222, %v223
        %v225 = vrot.slane %v224, 1
        %v226 = vadd.f32 %v224, %v225
        %v227 = vrsqrt.pop %v219
        %v228 = vmul.f32 %v219, %v227
        %vm229 = vcmp.eq.f32.partialorder %v219, inf
        %v230 = vsel %vm229, %v219, %v228
        %vm231 = vcmp.eq.f32.partialorder %v219, 0.0
        %v232 = vand.u32 %v219, 2147483648
        %v233 = vsel %vm231, %v232, %v230
        %v234 = vrsqrt.pop %v226
        %v235 = vmul.f32 %v226, %v234
        %vm236 = vcmp.eq.f32.partialorder %v226, inf
        %v237 = vsel %vm236, %v226, %v235
        %vm238 = vcmp.eq.f32.partialorder %v226, 0.0
        %v239 = vand.u32 %v226, 2147483648
        %v240 = vsel %vm238, %v239, %v237
        %v241 = vmul.f32 %v233, 0.5
        %v242 = vmul.f32 %v240, 0.5
        %v243 = vadd.f32 %v241, 1e-06
        %v244 = vadd.f32 %v242, 1e-06
        %v245 = vrcp.pop %v243
        %v246 = vrcp.pop %v244
        %v249 = vcombine.low %v245, %v246
        %v251 = vmul.f32 %v207, %v249
        %v252 = vld [vmem:[%s1] sm:$0xf]
        %254 = vset.pattern.permute.xlu0 0
        %255 = vperm.xlu0 %254, %v252
        %v256 = vpop.permute.xlu0 %255
        %v258 = vunpack.c.l.s4 839922192
        %v259 = vunpack.c.0.s8 %v258
        %v260 = vlaneseq
        %v261 = vshrl.u32 %v260, 7
        %v262 = vsub.s32 %v259, %v261
        %v263 = vrot.slane %v256, %v262
        %v265 = vmul.f32 %v251, %v263
        %v266 = vld [vmem:[%s2] sm:$0xf]
        %268 = vset.pattern.permute.xlu0 0
        %269 = vperm.xlu0 %268, %v266
        %v270 = vpop.permute.xlu0 %269
        %v272 = vunpack.c.l.s4 839922192
        %v273 = vunpack.c.0.s8 %v272
        %v274 = vlaneseq
        %v275 = vshrl.u32 %v274, 7
        %v276 = vsub.s32 %v273, %v275
        %v277 = vrot.slane %v270, %v276
        %v279 = vadd.f32 %v265, %v277
        %280 = vst [vmem:[%s204] sm:$0xff] %v279
        %s281 = sand.u32 %s112, 1
        %s282 = scalar_lea.sflag [#allocation4], %s281
        %s283 = sand.u32 %s112, 1
        %s284 = smul.addr %s283, 8
        %s285 = scalar_lea.vmem [#allocation5], %s284
        // Predicated region
        $region37: #{tpu_custom_call.1} parent=31 // pred_check
          %p286 = pneg %p122
        $region38: #{tpu_custom_call.1} parent=31 // pred_check_branch
          %288 = sbr.rel (%p286) target = $region40
        $region39: #{tpu_custom_call.1} parent=31 // pred_region
          %s289 = smul.u32 2, %s25
          %s291 = ssub.s32 128, 128
          %292 = vsyncadd %s282, %s291
          %s293 = smul.addr %s24, 2
          %s294 = sadd.s32 %s289, %s293
          %s295 = smul.addr %s294, 64
          %s296 = scalar_lea.hbm %s3, %s295
          %s298 = sshll.u32 %s285, 4
          %s299 = int_to_ptr.vmem [resolvable:$true] %s298
          %301 = dma.vmem_to_hbm [thread:$0]  %s299, 128, %s296, %s282
        $region40: #{tpu_custom_call.1} parent=31 // pred_fallthru
          _
      $region32: #{tpu_custom_call.1} parent=5 // pred_fallthru
        _
      %p302 = scmp.le.s32.totalorder 2, %s15
      // Predicated region
      $region41: #{tpu_custom_call.1} parent=5 // pred_check
        %p303 = pneg %p302
      $region42: #{tpu_custom_call.1} parent=5 // pred_check_branch
        %305 = sbr.rel (%p303) target = $region44
      $region43: #{tpu_custom_call.1} parent=5 // pred_region
        %s306 = ssub.s32 %s15, 2
        // Predicated region
        $region45: #{tpu_custom_call.1} parent=43 // pred_check
          %p307 = pneg %p128
        $region46: #{tpu_custom_call.1} parent=43 // pred_check_branch
          %309 = sbr.rel (%p307) target = $region48
        $region47: #{tpu_custom_call.1} parent=43 // pred_region
          %s310 = sand.u32 %s113, 1
          %s311 = scalar_lea.sflag [#allocation4], %s310
          %s312 = sand.u32 %s113, 1
          %s313 = smul.addr %s312, 8
          %s314 = scalar_lea.vmem [#allocation5], %s313
          %315 = dma.done %s311, 128
        $region48: #{tpu_custom_call.1} parent=43 // pred_fallthru
          _
      $region44: #{tpu_custom_call.1} parent=5 // pred_fallthru
        _
    $region6: #{tpu_custom_call.1} parent=1 // loop_footer
      %s19 = sadd.s32 1, %s15
    $region7: #{tpu_custom_call.1} parent=1 // loop_footer_branch
      %14 = sbr.rel target = $region3
    $region8: #{tpu_custom_call.1} parent=1 // loop_exit
      _
    %316 = vsyncpa [#allocation3], 1
    %s317 = scalar_lea.sflag [#allocation3], 1
    %318 = vsyncpa %s317, 1
    %319 = vsyncpa [#allocation4], 1
    %s320 = scalar_lea.sflag [#allocation4], 1
    %321 = vsyncpa %s320, 1

</llo_original>
